<compile_context>
chip_gen: v7x
topology: tpu7x:2x2x1
jax: 0.10.0
libtpu: 0.0.40
codegen_flags: <defaults>
</compile_context>

<pallas_src>
import functools

import jax
import jax.numpy as jnp
from jax import lax
from jax.experimental import pallas as pl
from jax.experimental.pallas import tpu as pltpu


def _uniform_bits24(x):
    """murmur3-style int32 finalizer (wrapping mults); returns bits in [0, 2^24)."""
    x = x ^ lax.shift_right_logical(x, jnp.int32(16))
    x = x * jnp.int32(-2048144789)                       # 0x85EBCA6B
    x = x ^ lax.shift_right_logical(x, jnp.int32(13))
    x = x * jnp.int32(-1028477387)                       # 0xC2B2AE35
    x = x ^ lax.shift_right_logical(x, jnp.int32(16))
    return lax.shift_right_logical(x, jnp.int32(8))      # non-negative 24 bits


def _attn_dropout_kernel(q_ref, k_ref, v_ref, scale_ref, o_ref, *,
                         dropout_p, seed_mix, total_m, total_n):
    q = q_ref[...]                       # (Bt, Mt, D)  bf16
    k = k_ref[...]                       # (Bt, N,  D)  bf16
    v = v_ref[...]                       # (Bt, N,  E)  bf16

    # Q K^T contracted directly over D (batched) -- no explicit transpose.
    qk = lax.dot_general(q, k, (((2,), (2,)), ((0,), (0,))),
                         preferred_element_type=jnp.float32)   # (Bt, Mt, N) f32

    # qk / inv_scale  ->  reciprocal of the small (Bt,1,N) vector + bcast mul.
    # (inv_scale is assumed nonzero; the demo keeps it away from zero.)
    scaled = qk * (1.0 / scale_ref[...])

    # Numerically stable softmax over the key axis.
    row_max = jnp.max(scaled, axis=-1, keepdims=True)
    e = jnp.exp(scaled - row_max)
    denom = jnp.sum(e, axis=-1, keepdims=True)                 # (Bt, Mt, 1)
    p_attn = e * (1.0 / denom)                                 # (Bt, Mt, N)

    if dropout_p > 0.0:   # static Python branch: p == 0 pays nothing
        bt, mt, n = p_attn.shape
        b0 = pl.program_id(0) * bt
        m0 = pl.program_id(1) * mt
        bi = lax.broadcasted_iota(jnp.int32, (bt, mt, n), 0) + b0
        mi = lax.broadcasted_iota(jnp.int32, (bt, mt, n), 1) + m0
        ni = lax.broadcasted_iota(jnp.int32, (bt, mt, n), 2)
        # Global element id -> hash, so the mask is independent of the tiling
        # and of grid execution order (safe with "parallel" axes).
        gid = (bi * jnp.int32(total_m) + mi) * jnp.int32(total_n) + ni
        bits = _uniform_bits24(gid + jnp.int32(seed_mix))
        thresh = int(round(dropout_p * float(1 << 24)))
        inv_keep = 1.0 / (1.0 - dropout_p)
        # Integer-threshold compare, 1/(1-p) folded into the select.
        p_attn = p_attn * jnp.where(bits >= thresh, inv_keep, 0.0)

    # probs @ V, bf16 operands with f32 accumulation.
    out = lax.dot_general(p_attn.astype(v.dtype), v,
                          (((2,), (1,)), ((0,), (0,))),
                          preferred_element_type=jnp.float32)  # (Bt, Mt, E)
    o_ref[...] = out.astype(o_ref.dtype)


def fused_attention(query, key, value, inv_scale_factor, dropout_p, seed=0,
                    block_b=None, block_m=None):
    B, M, D = query.shape
    Bk, N, Dk = key.shape
    Bv, Nv, E = value.shape
    assert (B, D) == (Bk, Dk) and (B, N) == (Bv, Nv)
    assert inv_scale_factor.shape == (B, N)
    assert 0.0 <= float(dropout_p) < 1.0, "dropout_p must be in [0, 1)"

    block_b = B if block_b is None else min(int(block_b), B)
    block_m = M if block_m is None else min(int(block_m), M)
    assert B % block_b == 0 and M % block_m == 0
    if block_m != M:
        assert block_m % 8 == 0            # (8, 128) tiling constraint

    # bf16 operands for the MXU (f32 accumulate in-kernel): halves HBM traffic
    # and roughly doubles matmul rate vs f32 operands.
    q = query.astype(jnp.bfloat16)
    k = key.astype(jnp.bfloat16)
    v = value.astype(jnp.bfloat16)
    scale3 = inv_scale_factor.reshape(B, 1, N).astype(jnp.float32)

    seed_mix = (int(seed) * 0x9E3779B1) % (1 << 31)
    kernel = functools.partial(_attn_dropout_kernel,
                               dropout_p=float(dropout_p), seed_mix=seed_mix,
                               total_m=M, total_n=N)

    # TODO(synk): for very large N this keeps the full (Mt, N) score tile
    # resident; a flash-style online softmax over N tiles would be needed at
    # real sequence lengths (and tiles should be sized for v7x's 64 MiB VMEM).
    grid = (B // block_b, M // block_m)
    return pl.pallas_call(
        kernel,
        out_shape=jax.ShapeDtypeStruct((B, M, E), jnp.float32),
        grid=grid,
        in_specs=[
            pl.BlockSpec((block_b, block_m, D), lambda b, m: (b, m, 0)),
            pl.BlockSpec((block_b, N, D), lambda b, m: (b, 0, 0)),
            pl.BlockSpec((block_b, N, E), lambda b, m: (b, 0, 0)),
            pl.BlockSpec((block_b, 1, N), lambda b, m: (b, 0, 0)),
        ],
        out_specs=pl.BlockSpec((block_b, block_m, E), lambda b, m: (b, m, 0)),
        # Dropout mask depends only on global indices, so both axes are
        # order-independent -> "parallel" lets v7x shard across its 2 TCs.
        compiler_params=pltpu.CompilerParams(
            dimension_semantics=("parallel", "parallel")),
    )(q, k, v, scale3)


if __name__ == "__main__":
    # Small shapes consistent with the module's forward pass:
    #   query (B, M, D), key (B, N, D), value (B, N, E), inv_scale (B, N).
    # N = 128 matches the original inv_scale_factor shape (2, 128); E = 128
    # keeps the output block lane-dense.  (The original fuzz shapes are
    # mutually incompatible for matmul, so consistent small shapes are used.)
    B, M, N, D, E = 2, 16, 128, 32, 128

    k0, k1, k2, k3 = jax.random.split(jax.random.PRNGKey(0), 4)
    query = jax.random.normal(k0, (B, M, D), dtype=jnp.float32)
    key = jax.random.normal(k1, (B, N, D), dtype=jnp.float32)
    value = jax.random.normal(k2, (B, N, E), dtype=jnp.float32)
    # Per-(batch, key) divisor; kept away from zero so the division is sane.
    inv_scale_factor = jax.random.uniform(k3, (B, N), dtype=jnp.float32,
                                          minval=0.5, maxval=1.5)
    # TODO(synk): the fuzz program's dropout_p = torch.randn(2).item() is
    # invalid (multi-element .item(), possibly negative); use a fixed valid p.
    dropout_p = 0.1

    out = fused_attention(query, key, value, inv_scale_factor, dropout_p, seed=0)
    jax.block_until_ready(out)
    assert out.shape == (B, M, E)
    assert bool(jnp.all(jnp.isfinite(out)))
    print("KERNEL_OK")
</pallas_src>

<mosaic_0001>
module attributes {stable_mosaic.version = 11 : i64} {
  func.func @_attn_dropout_kernel(%arg0: i32, %arg1: i32, %arg2: memref<2x16x32xbf16, #tpu.memory_space<vmem>>, %arg3: memref<2x128x32xbf16, #tpu.memory_space<vmem>>, %arg4: memref<2x128x128xbf16, #tpu.memory_space<vmem>>, %arg5: memref<2x1x128xf32, #tpu.memory_space<vmem>>, %arg6: memref<2x16x128xf32, #tpu.memory_space<vmem>>) attributes {dimension_semantics = [#tpu.dimension_semantics<parallel>, #tpu.dimension_semantics<parallel>], iteration_bounds = array<i64: 1, 1>, scalar_prefetch = 0 : i64, scratch_operands = 0 : i64, tpu.core_type = #tpu.core_type<tc>, window_params = [{transform_indices = @transform_0, window_bounds = array<i64: 2, 16, 32>}, {transform_indices = @transform_1, window_bounds = array<i64: 2, 128, 32>}, {transform_indices = @transform_2, window_bounds = array<i64: 2, 128, 128>}, {transform_indices = @transform_3, window_bounds = array<i64: 2, 1, 128>}, {transform_indices = @transform_4, window_bounds = array<i64: 2, 16, 128>}]} {
    %c0 = arith.constant 0 : index
    %c0_0 = arith.constant 0 : index
    %c0_1 = arith.constant 0 : index
    %0 = vector.load %arg2[%c0, %c0_0, %c0_1] : memref<2x16x32xbf16, #tpu.memory_space<vmem>>, vector<2x16x32xbf16>
    %c0_2 = arith.constant 0 : index
    %c0_3 = arith.constant 0 : index
    %c0_4 = arith.constant 0 : index
    %1 = vector.load %arg3[%c0_2, %c0_3, %c0_4] : memref<2x128x32xbf16, #tpu.memory_space<vmem>>, vector<2x128x32xbf16>
    %c0_5 = arith.constant 0 : index
    %c0_6 = arith.constant 0 : index
    %c0_7 = arith.constant 0 : index
    %2 = vector.load %arg4[%c0_5, %c0_6, %c0_7] : memref<2x128x128xbf16, #tpu.memory_space<vmem>>, vector<2x128x128xbf16>
    %cst = arith.constant dense<0.000000e+00> : vector<2x16x128xf32>
    %3 = tpu.matmul %0, %1, %cst {dimension_numbers = #tpu.dot_dimension_numbers<[2], [2], [1], [1], [0, 0, 0, 1, 1, 1], [0], [0]>} : vector<2x16x32xbf16>, vector<2x128x32xbf16>, vector<2x16x128xf32> -> vector<2x16x128xf32>
    %c0_8 = arith.constant 0 : index
    %c0_9 = arith.constant 0 : index
    %c0_10 = arith.constant 0 : index
    %4 = vector.load %arg5[%c0_8, %c0_9, %c0_10] : memref<2x1x128xf32, #tpu.memory_space<vmem>>, vector<2x1x128xf32>
    %cst_11 = arith.constant 1.000000e+00 : f32
    %5 = vector.broadcast %cst_11 : f32 to vector<2x1x128xf32>
    %6 = arith.divf %5, %4 : vector<2x1x128xf32>
    %7 = vector.broadcast %6 : vector<2x1x128xf32> to vector<2x16x128xf32>
    %8 = arith.mulf %3, %7 : vector<2x16x128xf32>
    %cst_12 = arith.constant dense<0xFF800000> : vector<2x16xf32>
    %9 = vector.multi_reduction <maximumf>, %8, %cst_12 [2] : vector<2x16x128xf32> to vector<2x16xf32>
    %10 = vector.shape_cast %9 : vector<2x16xf32> to vector<2x16x1xf32>
    %11 = vector.broadcast %10 : vector<2x16x1xf32> to vector<2x16x128xf32>
    %12 = arith.subf %8, %11 : vector<2x16x128xf32>
    %13 = math.exp %12 : vector<2x16x128xf32>
    %cst_13 = arith.constant dense<0.000000e+00> : vector<2x16xf32>
    %14 = vector.multi_reduction <add>, %13, %cst_13 [2] : vector<2x16x128xf32> to vector<2x16xf32>
    %15 = vector.shape_cast %14 : vector<2x16xf32> to vector<2x16x1xf32>
    %cst_14 = arith.constant 1.000000e+00 : f32
    %16 = vector.broadcast %cst_14 : f32 to vector<2x16x1xf32>
    %17 = arith.divf %16, %15 : vector<2x16x1xf32>
    %18 = vector.broadcast %17 : vector<2x16x1xf32> to vector<2x16x128xf32>
    %19 = arith.mulf %13, %18 : vector<2x16x128xf32>
    %c2_i32 = arith.constant 2 : i32
    %20 = arith.muli %arg0, %c2_i32 : i32
    %c16_i32 = arith.constant 16 : i32
    %21 = arith.muli %arg1, %c16_i32 : i32
    %22 = tpu.iota {dimensions = array<i32: 0>} : vector<2x16x128xi32>
    %23 = vector.broadcast %20 : i32 to vector<2x16x128xi32>
    %24 = arith.addi %22, %23 : vector<2x16x128xi32>
    %25 = tpu.iota {dimensions = array<i32: 1>} : vector<2x16x128xi32>
    %26 = vector.broadcast %21 : i32 to vector<2x16x128xi32>
    %27 = arith.addi %25, %26 : vector<2x16x128xi32>
    %28 = tpu.iota {dimensions = array<i32: 2>} : vector<2x16x128xi32>
    %c16_i32_15 = arith.constant 16 : i32
    %29 = vector.broadcast %c16_i32_15 : i32 to vector<2x16x128xi32>
    %30 = arith.muli %24, %29 : vector<2x16x128xi32>
    %31 = arith.addi %30, %27 : vector<2x16x128xi32>
    %c128_i32 = arith.constant 128 : i32
    %32 = vector.broadcast %c128_i32 : i32 to vector<2x16x128xi32>
    %33 = arith.muli %31, %32 : vector<2x16x128xi32>
    %34 = arith.addi %33, %28 : vector<2x16x128xi32>
    %c0_i32 = arith.constant 0 : i32
    %35 = vector.broadcast %c0_i32 : i32 to vector<2x16x128xi32>
    %36 = arith.addi %34, %35 : vector<2x16x128xi32>
    %c16_i32_16 = arith.constant 16 : i32
    %37 = vector.broadcast %c16_i32_16 : i32 to vector<2x16x128xi32>
    %38 = arith.shrui %36, %37 : vector<2x16x128xi32>
    %39 = arith.xori %36, %38 : vector<2x16x128xi32>
    %c-2048144789_i32 = arith.constant -2048144789 : i32
    %40 = vector.broadcast %c-2048144789_i32 : i32 to vector<2x16x128xi32>
    %41 = arith.muli %39, %40 : vector<2x16x128xi32>
    %c13_i32 = arith.constant 13 : i32
    %42 = vector.broadcast %c13_i32 : i32 to vector<2x16x128xi32>
    %43 = arith.shrui %41, %42 : vector<2x16x128xi32>
    %44 = arith.xori %41, %43 : vector<2x16x128xi32>
    %c-1028477387_i32 = arith.constant -1028477387 : i32
    %45 = vector.broadcast %c-1028477387_i32 : i32 to vector<2x16x128xi32>
    %46 = arith.muli %44, %45 : vector<2x16x128xi32>
    %c16_i32_17 = arith.constant 16 : i32
    %47 = vector.broadcast %c16_i32_17 : i32 to vector<2x16x128xi32>
    %48 = arith.shrui %46, %47 : vector<2x16x128xi32>
    %49 = arith.xori %46, %48 : vector<2x16x128xi32>
    %c8_i32 = arith.constant 8 : i32
    %50 = vector.broadcast %c8_i32 : i32 to vector<2x16x128xi32>
    %51 = arith.shrui %49, %50 : vector<2x16x128xi32>
    %c1677722_i32 = arith.constant 1677722 : i32
    %52 = vector.broadcast %c1677722_i32 : i32 to vector<2x16x128xi32>
    %53 = arith.cmpi sge, %51, %52 : vector<2x16x128xi32>
    %cst_18 = arith.constant 1.11111116 : f32
    %cst_19 = arith.constant 0.000000e+00 : f32
    %54 = vector.broadcast %cst_18 : f32 to vector<2x16x128xf32>
    %55 = vector.broadcast %cst_19 : f32 to vector<2x16x128xf32>
    %56 = arith.select %53, %54, %55 : vector<2x16x128xi1>, vector<2x16x128xf32>
    %57 = arith.mulf %19, %56 : vector<2x16x128xf32>
    %58 = arith.truncf %57 : vector<2x16x128xf32> to vector<2x16x128xbf16>
    %cst_20 = arith.constant dense<0.000000e+00> : vector<2x16x128xf32>
    %59 = tpu.matmul %58, %2, %cst_20 {dimension_numbers = #tpu.dot_dimension_numbers<[2], [1], [1], [2], [0, 0, 0, 1, 1, 2], [0], [0]>} : vector<2x16x128xbf16>, vector<2x128x128xbf16>, vector<2x16x128xf32> -> vector<2x16x128xf32>
    %c0_21 = arith.constant 0 : index
    %c0_22 = arith.constant 0 : index
    %c0_23 = arith.constant 0 : index
    %60 = vector.load %arg6[%c0_21, %c0_22, %c0_23] : memref<2x16x128xf32, #tpu.memory_space<vmem>>, vector<2x16x128xf32>
    tpu.vector_store %arg6[%c0_21, %c0_22, %c0_23], %59 {strides = array<i32>} : memref<2x16x128xf32, #tpu.memory_space<vmem>>, vector<2x16x128xf32>,
    return
  }
  func.func @transform_0(%arg0: i32, %arg1: i32) -> (i32, i32, i32) {
    %c0_i32 = arith.constant 0 : i32
    %c0_i32_0 = arith.constant 0 : i32
    return %arg0, %arg1, %c0_i32 : i32, i32, i32
  }
  func.func @transform_1(%arg0: i32, %arg1: i32) -> (i32, i32, i32) {
    %c0_i32 = arith.constant 0 : i32
    %c0_i32_0 = arith.constant 0 : i32
    %c0_i32_1 = arith.constant 0 : i32
    return %arg0, %c0_i32, %c0_i32_0 : i32, i32, i32
  }
  func.func @transform_2(%arg0: i32, %arg1: i32) -> (i32, i32, i32) {
    %c0_i32 = arith.constant 0 : i32
    %c0_i32_0 = arith.constant 0 : i32
    %c0_i32_1 = arith.constant 0 : i32
    return %arg0, %c0_i32, %c0_i32_0 : i32, i32, i32
  }
  func.func @transform_3(%arg0: i32, %arg1: i32) -> (i32, i32, i32) {
    %c0_i32 = arith.constant 0 : i32
    %c0_i32_0 = arith.constant 0 : i32
    %c0_i32_1 = arith.constant 0 : i32
    return %arg0, %c0_i32, %c0_i32_0 : i32, i32, i32
  }
  func.func @transform_4(%arg0: i32, %arg1: i32) -> (i32, i32, i32) {
    %c0_i32 = arith.constant 0 : i32
    %c0_i32_0 = arith.constant 0 : i32
    return %arg0, %arg1, %c0_i32 : i32, i32, i32
  }
}

</mosaic_0001>

<llo_original>
// kernel: tpu_custom_call.1
$region0: #{tpu_custom_call.1}
  #allocation0 [shape = 'u32[]', space=smem, size = 0x4, offset = 0x4, fixed_abs, tag = 'smem constant byte address 0x4 - core index']
  #allocation1 [shape = 'u32[144,128]{1,0:T(1,128)}', space=vmem, size = 0x12000, scoped, tag = 'internal scratch']
  %s0 = inlined_call_operand.vmem [shape: bf16[2,16,32], index: 0, kind: input, shape index: {}]
  %s1 = inlined_call_operand.vmem [shape: bf16[2,128,32], index: 1, kind: input, shape index: {}]
  %s2 = inlined_call_operand.vmem [shape: bf16[2,128,128], index: 2, kind: input, shape index: {}]
  %s3 = inlined_call_operand.vmem [shape: f32[2,1,128], index: 3, kind: input, shape index: {}]
  %s4 = inlined_call_operand.hbm [shape: f32[2,16,128], index: 4, kind: output, shape index: {}]
  %s5 = sld [smem:[#allocation0]]
  $region26: #{tpu_custom_call.1} parent=0
    _
  %s7 = ssub.s32 1, %s5
  %s8 = scalar_select 0, %s7, %s5
  $region1: #{tpu_custom_call.1} parent=0
    #allocation2 [shape = 'u8[16384]{0}', space=vmem, size = 0x4000, scoped, tag = 'output window, operand 0, single buffered']
    #allocation3 [shape = 's32[1]{0}', space=sflag, size = 0x4, scoped, tag = 'scoped memory for tpu_custom_call.1']
    %9 = vsyncpa [#allocation3], 0
    // Predicated region
    $region2: #{tpu_custom_call.1} parent=1 // pred_check
      _
    $region3: #{tpu_custom_call.1} parent=1 // pred_check_branch
      %11 = sbr.rel (0) target = $region5
    $region4: #{tpu_custom_call.1} parent=1 // pred_region
      _
    $region5: #{tpu_custom_call.1} parent=1 // pred_fallthru
      _
    // Predicated region
    $region6: #{tpu_custom_call.1} parent=1 // pred_check
      _
    $region7: #{tpu_custom_call.1} parent=1 // pred_check_branch
      %13 = sbr.rel (0) target = $region9
    $region8: #{tpu_custom_call.1} parent=1 // pred_region
      _
    $region9: #{tpu_custom_call.1} parent=1 // pred_fallthru
      _
    // Predicated region
    $region10: #{tpu_custom_call.1} parent=1 // pred_check
      _
    $region11: #{tpu_custom_call.1} parent=1 // pred_check_branch
      %15 = sbr.rel (0) target = $region13
    $region12: #{tpu_custom_call.1} parent=1 // pred_region
      _
    $region13: #{tpu_custom_call.1} parent=1 // pred_fallthru
      _
    // Predicated region
    $region14: #{tpu_custom_call.1} parent=1 // pred_check
      _
    $region15: #{tpu_custom_call.1} parent=1 // pred_check_branch
      %17 = sbr.rel (0) target = $region17
    $region16: #{tpu_custom_call.1} parent=1 // pred_region
      _
    $region17: #{tpu_custom_call.1} parent=1 // pred_fallthru
      _
    %v19 = vld [vmem:[%s0] sm:$0xf]
    %v20 = vld [vmem:[%s0 + $0x4] sm:$0xf]
    %v21 = vld [vmem:[%s0 + $0x8] sm:$0xf]
    %v22 = vld [vmem:[%s0 + $0xc] sm:$0xf]
    %v23 = vld [vmem:[%s1] sm:$0xf]
    %v24 = vld [vmem:[%s1 + $0x4] sm:$0xf]
    %v25 = vld [vmem:[%s1 + $0x8] sm:$0xf]
    %v26 = vld [vmem:[%s1 + $0xc] sm:$0xf]
    %v27 = vld [vmem:[%s1 + $0x10] sm:$0xf]
    %v28 = vld [vmem:[%s1 + $0x14] sm:$0xf]
    %v29 = vld [vmem:[%s1 + $0x18] sm:$0xf]
    %v30 = vld [vmem:[%s1 + $0x1c] sm:$0xf]
    %v31 = vld [vmem:[%s1 + $0x20] sm:$0xf]
    %v32 = vld [vmem:[%s1 + $0x24] sm:$0xf]
    %v33 = vld [vmem:[%s1 + $0x28] sm:$0xf]
    %v34 = vld [vmem:[%s1 + $0x2c] sm:$0xf]
    %v35 = vld [vmem:[%s1 + $0x30] sm:$0xf]
    %v36 = vld [vmem:[%s1 + $0x34] sm:$0xf]
    %v37 = vld [vmem:[%s1 + $0x38] sm:$0xf]
    %v38 = vld [vmem:[%s1 + $0x3c] sm:$0xf]
    %v39 = vld [vmem:[%s1 + $0x40] sm:$0xf]
    %v40 = vld [vmem:[%s1 + $0x44] sm:$0xf]
    %v41 = vld [vmem:[%s1 + $0x48] sm:$0xf]
    %v42 = vld [vmem:[%s1 + $0x4c] sm:$0xf]
    %v43 = vld [vmem:[%s1 + $0x50] sm:$0xf]
    %v44 = vld [vmem:[%s1 + $0x54] sm:$0xf]
    %v45 = vld [vmem:[%s1 + $0x58] sm:$0xf]
    %v46 = vld [vmem:[%s1 + $0x5c] sm:$0xf]
    %v47 = vld [vmem:[%s1 + $0x60] sm:$0xf]
    %v48 = vld [vmem:[%s1 + $0x64] sm:$0xf]
    %v49 = vld [vmem:[%s1 + $0x68] sm:$0xf]
    %v50 = vld [vmem:[%s1 + $0x6c] sm:$0xf]
    %v51 = vld [vmem:[%s1 + $0x70] sm:$0xf]
    %v52 = vld [vmem:[%s1 + $0x74] sm:$0xf]
    %v53 = vld [vmem:[%s1 + $0x78] sm:$0xf]
    %v54 = vld [vmem:[%s1 + $0x7c] sm:$0xf]
    %v55 = vld [vmem:[%s2] sm:$0xf]
    %v56 = vld [vmem:[%s2 + $0x4] sm:$0xf]
    %v57 = vld [vmem:[%s2 + $0x8] sm:$0xf]
    %v58 = vld [vmem:[%s2 + $0xc] sm:$0xf]
    %v59 = vld [vmem:[%s2 + $0x10] sm:$0xf]
    %v60 = vld [vmem:[%s2 + $0x14] sm:$0xf]
    %v61 = vld [vmem:[%s2 + $0x18] sm:$0xf]
    %v62 = vld [vmem:[%s2 + $0x1c] sm:$0xf]
    %v63 = vld [vmem:[%s2 + $0x20] sm:$0xf]
    %v64 = vld [vmem:[%s2 + $0x24] sm:$0xf]
    %v65 = vld [vmem:[%s2 + $0x28] sm:$0xf]
    %v66 = vld [vmem:[%s2 + $0x2c] sm:$0xf]
    %v67 = vld [vmem:[%s2 + $0x30] sm:$0xf]
    %v68 = vld [vmem:[%s2 + $0x34] sm:$0xf]
    %v69 = vld [vmem:[%s2 + $0x38] sm:$0xf]
    %v70 = vld [vmem:[%s2 + $0x3c] sm:$0xf]
    %v71 = vld [vmem:[%s2 + $0x40] sm:$0xf]
    %v72 = vld [vmem:[%s2 + $0x44] sm:$0xf]
    %v73 = vld [vmem:[%s2 + $0x48] sm:$0xf]
    %v74 = vld [vmem:[%s2 + $0x4c] sm:$0xf]
    %v75 = vld [vmem:[%s2 + $0x50] sm:$0xf]
    %v76 = vld [vmem:[%s2 + $0x54] sm:$0xf]
    %v77 = vld [vmem:[%s2 + $0x58] sm:$0xf]
    %v78 = vld [vmem:[%s2 + $0x5c] sm:$0xf]
    %v79 = vld [vmem:[%s2 + $0x60] sm:$0xf]
    %v80 = vld [vmem:[%s2 + $0x64] sm:$0xf]
    %v81 = vld [vmem:[%s2 + $0x68] sm:$0xf]
    %v82 = vld [vmem:[%s2 + $0x6c] sm:$0xf]
    %v83 = vld [vmem:[%s2 + $0x70] sm:$0xf]
    %v84 = vld [vmem:[%s2 + $0x74] sm:$0xf]
    %v85 = vld [vmem:[%s2 + $0x78] sm:$0xf]
    %v86 = vld [vmem:[%s2 + $0x7c] sm:$0xf]
    %v89 = vunpack.c.l.b16 %v19
    %v90 = vunpack.c.l.b16 %v20
    %v91 = vpack.c.b16 %v90, %v89
    %v108 = vunpack.c.l.b16 %v23
    %v109 = vunpack.c.l.b16 %v24
    %v110 = vunpack.c.l.b16 %v25
    %v111 = vunpack.c.l.b16 %v26
    %v112 = vunpack.c.l.b16 %v27
    %v113 = vunpack.c.l.b16 %v28
    %v114 = vunpack.c.l.b16 %v29
    %v115 = vunpack.c.l.b16 %v30
    %v116 = vunpack.c.l.b16 %v31
    %v117 = vunpack.c.l.b16 %v32
    %v118 = vunpack.c.l.b16 %v33
    %v119 = vunpack.c.l.b16 %v34
    %v120 = vunpack.c.l.b16 %v35
    %v121 = vunpack.c.l.b16 %v36
    %v122 = vunpack.c.l.b16 %v37
    %v123 = vunpack.c.l.b16 %v38
    %v124 = vpack.c.b16 %v109, %v108
    %v125 = vpack.c.b16 %v111, %v110
    %v126 = vpack.c.b16 %v113, %v112
    %v127 = vpack.c.b16 %v115, %v114
    %v128 = vpack.c.b16 %v117, %v116
    %v129 = vpack.c.b16 %v119, %v118
    %v130 = vpack.c.b16 %v121, %v120
    %v131 = vpack.c.b16 %v123, %v122
    %vm132 = vcmask 261120
    %v134 = vsel %vm132, %v91, 0
    %v137 = vsel %vm132, %v124, 0
    %v140 = vsel %vm132, %v125, 0
    %v143 = vsel %vm132, %v126, 0
    %v146 = vsel %vm132, %v127, 0
    %v149 = vsel %vm132, %v128, 0
    %v152 = vsel %vm132, %v129, 0
    %v155 = vsel %vm132, %v130, 0
    %v158 = vsel %vm132, %v131, 0
    %160 = vmatprep.subr.bf16.mxu0 0
    %161 = vmatpush1.bf16.xpose.msra.mxu0 %v137
    %162 = vmatprep.subr.bf16.mxu0 0
    %163 = vmatpush1.bf16.xpose.msra.mxu0 %v140
    %164 = vmatprep.subr.bf16.mxu0 0
    %165 = vmatpush1.bf16.xpose.msra.mxu0 %v143
    %166 = vmatprep.subr.bf16.mxu0 0
    %167 = vmatpush1.bf16.xpose.msra.mxu0 %v146
    %168 = vmatprep.subr.bf16.mxu0 0
    %169 = vmatpush1.bf16.xpose.msra.mxu0 %v149
    %170 = vmatprep.subr.bf16.mxu0 0
    %171 = vmatpush1.bf16.xpose.msra.mxu0 %v152
    %172 = vmatprep.subr.bf16.mxu0 0
    %173 = vmatpush1.bf16.xpose.msra.mxu0 %v155
    %174 = vmatprep.subr.bf16.mxu0 0
    %175 = vmatpush1.bf16.xpose.msra.mxu0 %v158
    %176 = vmatprep.subr.bf16.mxu0 0
    %177 = vmatpush1.bf16.xpose.msra.mxu0 0
    %178 = vmatprep.subr.bf16.mxu0 0
    %179 = vmatpush1.bf16.xpose.msra.mxu0 0
    %180 = vmatprep.subr.bf16.mxu0 0
    %181 = vmatpush1.bf16.xpose.msra.mxu0 0
    %182 = vmatprep.subr.bf16.mxu0 0
    %183 = vmatpush1.bf16.xpose.msra.mxu0 0
    %184 = vmatprep.subr.bf16.mxu0 0
    %185 = vmatpush1.bf16.xpose.msra.mxu0 0
    %186 = vmatprep.subr.bf16.mxu0 0
    %187 = vmatpush1.bf16.xpose.msra.mxu0 0
    %188 = vmatprep.subr.bf16.mxu0 0
    %189 = vmatpush1.bf16.xpose.msra.mxu0 0
    %190 = vmatprep.subr.bf16.mxu0 0
    %191 = vmatpush1.bf16.xpose.msra.mxu0 0
    %192 = vmatprep.mubr.bf16.mxu0 0
    %193 = vmatmul.mubr.bf16.gmra.mrb[0].mxu0 %v134
    %v194 = vpop.f32.mrb[0].mxu0
    %v195 = vadd.f32 0.0, %v194
    %v196 = vpop.f32.mrb[0].mxu0
    %v197 = vpop.f32.mrb[0].mxu0
    %v198 = vadd.f32 0.0, %v197
    %v199 = vpop.f32.mrb[0].mxu0
    %200 = vdwg.mxu0
    %v203 = vunpack.c.l.b16 %v21
    %v204 = vunpack.c.l.b16 %v22
    %v205 = vpack.c.b16 %v204, %v203
    %v222 = vunpack.c.l.b16 %v39
    %v223 = vunpack.c.l.b16 %v40
    %v224 = vunpack.c.l.b16 %v41
    %v225 = vunpack.c.l.b16 %v42
    %v226 = vunpack.c.l.b16 %v43
    %v227 = vunpack.c.l.b16 %v44
    %v228 = vunpack.c.l.b16 %v45
    %v229 = vunpack.c.l.b16 %v46
    %v230 = vunpack.c.l.b16 %v47
    %v231 = vunpack.c.l.b16 %v48
    %v232 = vunpack.c.l.b16 %v49
    %v233 = vunpack.c.l.b16 %v50
    %v234 = vunpack.c.l.b16 %v51
    %v235 = vunpack.c.l.b16 %v52
    %v236 = vunpack.c.l.b16 %v53
    %v237 = vunpack.c.l.b16 %v54
    %v238 = vpack.c.b16 %v223, %v222
    %v239 = vpack.c.b16 %v225, %v224
    %v240 = vpack.c.b16 %v227, %v226
    %v241 = vpack.c.b16 %v229, %v228
    %v242 = vpack.c.b16 %v231, %v230
    %v243 = vpack.c.b16 %v233, %v232
    %v244 = vpack.c.b16 %v235, %v234
    %v245 = vpack.c.b16 %v237, %v236
    %v247 = vsel %vm132, %v205, 0
    %v250 = vsel %vm132, %v238, 0
    %v253 = vsel %vm132, %v239, 0
    %v256 = vsel %vm132, %v240, 0
    %v259 = vsel %vm132, %v241, 0
    %v262 = vsel %vm132, %v242, 0
    %v265 = vsel %vm132, %v243, 0
    %v268 = vsel %vm132, %v244, 0
    %v271 = vsel %vm132, %v245, 0
    %273 = vmatprep.subr.bf16.mxu0 0
    %274 = vmatpush1.bf16.xpose.msra.mxu0 %v250
    %275 = vmatprep.subr.bf16.mxu0 0
    %276 = vmatpush1.bf16.xpose.msra.mxu0 %v253
    %277 = vmatprep.subr.bf16.mxu0 0
    %278 = vmatpush1.bf16.xpose.msra.mxu0 %v256
    %279 = vmatprep.subr.bf16.mxu0 0
    %280 = vmatpush1.bf16.xpose.msra.mxu0 %v259
    %281 = vmatprep.subr.bf16.mxu0 0
    %282 = vmatpush1.bf16.xpose.msra.mxu0 %v262
    %283 = vmatprep.subr.bf16.mxu0 0
    %284 = vmatpush1.bf16.xpose.msra.mxu0 %v265
    %285 = vmatprep.subr.bf16.mxu0 0
    %286 = vmatpush1.bf16.xpose.msra.mxu0 %v268
    %287 = vmatprep.subr.bf16.mxu0 0
    %288 = vmatpush1.bf16.xpose.msra.mxu0 %v271
    %289 = vmatprep.subr.bf16.mxu0 0
    %290 = vmatpush1.bf16.xpose.msra.mxu0 0
    %291 = vmatprep.subr.bf16.mxu0 0
    %292 = vmatpush1.bf16.xpose.msra.mxu0 0
    %293 = vmatprep.subr.bf16.mxu0 0
    %294 = vmatpush1.bf16.xpose.msra.mxu0 0
    %295 = vmatprep.subr.bf16.mxu0 0
    %296 = vmatpush1.bf16.xpose.msra.mxu0 0
    %297 = vmatprep.subr.bf16.mxu0 0
    %298 = vmatpush1.bf16.xpose.msra.mxu0 0
    %299 = vmatprep.subr.bf16.mxu0 0
    %300 = vmatpush1.bf16.xpose.msra.mxu0 0
    %301 = vmatprep.subr.bf16.mxu0 0
    %302 = vmatpush1.bf16.xpose.msra.mxu0 0
    %303 = vmatprep.subr.bf16.mxu0 0
    %304 = vmatpush1.bf16.xpose.msra.mxu0 0
    %305 = vmatprep.mubr.bf16.mxu0 0
    %306 = vmatmul.mubr.bf16.gmra.mrb[0].mxu0 %v247
    %v307 = vpop.f32.mrb[0].mxu0
    %v308 = vadd.f32 0.0, %v307
    %v309 = vpop.f32.mrb[0].mxu0
    %v310 = vpop.f32.mrb[0].mxu0
    %v311 = vadd.f32 0.0, %v310
    %v312 = vpop.f32.mrb[0].mxu0
    %313 = vdwg.mxu0
    %v314 = vld [vmem:[%s3] sm:$0x1]
    %v315 = vld [vmem:[%s3 + $0x1] sm:$0x1]
    %v316 = vrcp.pop %v314
    %v317 = vmul.f32 1.0, %v316
    %v318 = vrcp.pop %v315
    %v319 = vmul.f32 1.0, %v318
    %v322 = vlaneseq
    %v323 = vshrl.u32 %v322, 7
    %v324 = vsub.s32 0, %v323
    %v325 = vrot.slane %v317, %v324
    %v326 = vlaneseq
    %v327 = vshrl.u32 %v326, 7
    %v328 = vsub.s32 0, %v327
    %v329 = vrot.slane %v319, %v328
    %v332 = vmul.f32 %v195, %v325
    %v333 = vmul.f32 %v198, %v325
    %v334 = vmul.f32 %v308, %v329
    %v335 = vmul.f32 %v311, %v329
    %336 = vmax.xlane.f32.xlu0 %v332
    %v337 = vpop.xlane.xlu0 %336
    %338 = vmax.xlane.f32.xlu0 %v333
    %v339 = vpop.xlane.xlu0 %338
    %340 = vmax.xlane.f32.xlu0 %v334
    %v341 = vpop.xlane.xlu0 %340
    %342 = vmax.xlane.f32.xlu0 %v335
    %v343 = vpop.xlane.xlu0 %342
    %v344 = vsub.f32 %v332, %v337
    %v345 = vsub.f32 %v333, %v339
    %v346 = vsub.f32 %v334, %v341
    %v347 = vsub.f32 %v335, %v343
    %v348 = vmul.f32 %v344, 1.442695
    %v349 = vpow.pop %v348
    %v350 = vmul.f32 %v345, 1.442695
    %v351 = vpow.pop %v350
    %v352 = vmul.f32 %v346, 1.442695
    %v353 = vpow.pop %v352
    %v354 = vmul.f32 %v347, 1.442695
    %v355 = vpow.pop %v354
    %356 = vadd.xlane.f32.xlu0 %v349
    %v357 = vpop.xlane.xlu0 %356
    %358 = vadd.xlane.f32.xlu0 %v351
    %v359 = vpop.xlane.xlu0 %358
    %360 = vadd.xlane.f32.xlu0 %v353
    %v361 = vpop.xlane.xlu0 %360
    %362 = vadd.xlane.f32.xlu0 %v355
    %v363 = vpop.xlane.xlu0 %362
    %v364 = vrcp.pop %v357
    %v365 = vmul.f32 1.0, %v364
    %v366 = vrcp.pop %v359
    %v367 = vmul.f32 1.0, %v366
    %v368 = vrcp.pop %v361
    %v369 = vmul.f32 1.0, %v368
    %v370 = vrcp.pop %v363
    %v371 = vmul.f32 1.0, %v370
    %v372 = vmul.f32 %v349, %v365
    %v373 = vmul.f32 %v351, %v367
    %v374 = vmul.f32 %v353, %v369
    %v375 = vmul.f32 %v355, %v371
    %s376 = smul.u32 0, 2
    %s377 = smul.u32 0, 16
    %v378 = vstv %s376
    %v379 = vadd.s32 %v378, 1
    %v380 = vlaneseq
    %v381 = vshrl.u32 %v380, 7
    %v382 = vadd.s32 %v381, 8
    %v383 = vstv %s377
    %v384 = vadd.s32 %v381, %v383
    %v385 = vadd.s32 %v382, %v383
    %v386 = vlaneseq
    %v387 = vand.u32 %v386, 127
    %v388 = vmul.u32 %v378, 16
    %v389 = vmul.u32 %v379, 16
    %v390 = vadd.s32 %v388, %v384
    %v391 = vadd.s32 %v388, %v385
    %v392 = vadd.s32 %v389, %v384
    %v393 = vadd.s32 %v389, %v385
    %v394 = vmul.u32 %v390, 128
    %v395 = vmul.u32 %v391, 128
    %v396 = vmul.u32 %v392, 128
    %v397 = vmul.u32 %v393, 128
    %v398 = vadd.s32 %v394, %v387
    %v399 = vadd.s32 %v395, %v387
    %v400 = vadd.s32 %v396, %v387
    %v401 = vadd.s32 %v397, %v387
    %v402 = vshrl.u32 %v398, 16
    %v403 = vshrl.u32 %v399, 16
    %v404 = vshrl.u32 %v400, 16
    %v405 = vshrl.u32 %v401, 16
    %v406 = vxor.u32 %v398, %v402
    %v407 = vxor.u32 %v399, %v403
    %v408 = vxor.u32 %v400, %v404
    %v409 = vxor.u32 %v401, %v405
    %v410 = vmul.u32 %v406, 2246822507
    %v411 = vmul.u32 %v407, 2246822507
    %v412 = vmul.u32 %v408, 2246822507
    %v413 = vmul.u32 %v409, 2246822507
    %v414 = vshrl.u32 %v410, 13
    %v415 = vshrl.u32 %v411, 13
    %v416 = vshrl.u32 %v412, 13
    %v417 = vshrl.u32 %v413, 13
    %v418 = vxor.u32 %v410, %v414
    %v419 = vxor.u32 %v411, %v415
    %v420 = vxor.u32 %v412, %v416
    %v421 = vxor.u32 %v413, %v417
    %v422 = vmul.u32 %v418, 3266489909
    %v423 = vmul.u32 %v419, 3266489909
    %v424 = vmul.u32 %v420, 3266489909
    %v425 = vmul.u32 %v421, 3266489909
    %v426 = vshrl.u32 %v422, 16
    %v427 = vshrl.u32 %v423, 16
    %v428 = vshrl.u32 %v424, 16
    %v429 = vshrl.u32 %v425, 16
    %v430 = vxor.u32 %v422, %v426
    %v431 = vxor.u32 %v423, %v427
    %v432 = vxor.u32 %v424, %v428
    %v433 = vxor.u32 %v425, %v429
    %v434 = vshrl.u32 %v430, 8
    %v435 = vshrl.u32 %v431, 8
    %v436 = vshrl.u32 %v432, 8
    %v437 = vshrl.u32 %v433, 8
    %vm438 = vcmp.ge.s32.totalorder %v434, 1677722
    %vm439 = vcmp.ge.s32.totalorder %v435, 1677722
    %vm440 = vcmp.ge.s32.totalorder %v436, 1677722
    %vm441 = vcmp.ge.s32.totalorder %v437, 1677722
    %v442 = vsel %vm438, 1.1111112, 0.0
    %v443 = vsel %vm439, 1.1111112, 0.0
    %v444 = vsel %vm440, 1.1111112, 0.0
    %v445 = vsel %vm441, 1.1111112, 0.0
    %v446 = vmul.f32 %v372, %v442
    %v447 = vmul.f32 %v373, %v443
    %v448 = vmul.f32 %v374, %v444
    %v449 = vmul.f32 %v375, %v445
    %v450 = vpack.c.bf16 %v447, %v446
    %v451 = vpack.c.bf16 %v449, %v448
    %v468 = vunpack.c.l.b16 %v55
    %v469 = vunpack.c.l.b16 %v56
    %v470 = vunpack.c.l.b16 %v57
    %v471 = vunpack.c.l.b16 %v58
    %v472 = vunpack.c.l.b16 %v59
    %v473 = vunpack.c.l.b16 %v60
    %v474 = vunpack.c.l.b16 %v61
    %v475 = vunpack.c.l.b16 %v62
    %v476 = vunpack.c.l.b16 %v63
    %v477 = vunpack.c.l.b16 %v64
    %v478 = vunpack.c.l.b16 %v65
    %v479 = vunpack.c.l.b16 %v66
    %v480 = vunpack.c.l.b16 %v67
    %v481 = vunpack.c.l.b16 %v68
    %v482 = vunpack.c.l.b16 %v69
    %v483 = vunpack.c.l.b16 %v70
    %v484 = vpack.c.b16 %v469, %v468
    %v485 = vpack.c.b16 %v471, %v470
    %v486 = vpack.c.b16 %v473, %v472
    %v487 = vpack.c.b16 %v475, %v474
    %v488 = vpack.c.b16 %v477, %v476
    %v489 = vpack.c.b16 %v479, %v478
    %v490 = vpack.c.b16 %v481, %v480
    %v491 = vpack.c.b16 %v483, %v482
    %500 = vmatprep.subr.bf16.mxu0 0
    %501 = vmatpush1.bf16.msra.mxu0 %v484
    %502 = vmatprep.subr.bf16.mxu0 0
    %503 = vmatpush1.bf16.msra.mxu0 %v485
    %504 = vmatprep.subr.bf16.mxu0 0
    %505 = vmatpush1.bf16.msra.mxu0 %v486
    %506 = vmatprep.subr.bf16.mxu0 0
    %507 = vmatpush1.bf16.msra.mxu0 %v487
    %508 = vmatprep.subr.bf16.mxu0 0
    %509 = vmatpush1.bf16.msra.mxu0 %v488
    %510 = vmatprep.subr.bf16.mxu0 0
    %511 = vmatpush1.bf16.msra.mxu0 %v489
    %512 = vmatprep.subr.bf16.mxu0 0
    %513 = vmatpush1.bf16.msra.mxu0 %v490
    %514 = vmatprep.subr.bf16.mxu0 0
    %515 = vmatpush1.bf16.msra.mxu0 %v491
    %516 = vmatprep.subr.bf16.mxu0 0
    %517 = vmatpush1.bf16.msra.mxu0 0
    %518 = vmatprep.subr.bf16.mxu0 0
    %519 = vmatpush1.bf16.msra.mxu0 0
    %520 = vmatprep.subr.bf16.mxu0 0
    %521 = vmatpush1.bf16.msra.mxu0 0
    %522 = vmatprep.subr.bf16.mxu0 0
    %523 = vmatpush1.bf16.msra.mxu0 0
    %524 = vmatprep.subr.bf16.mxu0 0
    %525 = vmatpush1.bf16.msra.mxu0 0
    %526 = vmatprep.subr.bf16.mxu0 0
    %527 = vmatpush1.bf16.msra.mxu0 0
    %528 = vmatprep.subr.bf16.mxu0 0
    %529 = vmatpush1.bf16.msra.mxu0 0
    %530 = vmatprep.subr.bf16.mxu0 0
    %531 = vmatpush1.bf16.msra.mxu0 0
    %532 = vmatprep.mubr.bf16.mxu0 0
    %533 = vmatmul.mubr.bf16.gmra.mrb[0].mxu0 %v450
    %v534 = vpop.f32.mrb[0].mxu0
    %v535 = vadd.f32 0.0, %v534
    %v536 = vpop.f32.mrb[0].mxu0
    %v537 = vpop.f32.mrb[0].mxu0
    %v538 = vadd.f32 0.0, %v537
    %v539 = vpop.f32.mrb[0].mxu0
    %540 = vdwg.mxu0
    %v557 = vunpack.c.l.b16 %v71
    %v558 = vunpack.c.l.b16 %v72
    %v559 = vunpack.c.l.b16 %v73
    %v560 = vunpack.c.l.b16 %v74
    %v561 = vunpack.c.l.b16 %v75
    %v562 = vunpack.c.l.b16 %v76
    %v563 = vunpack.c.l.b16 %v77
    %v564 = vunpack.c.l.b16 %v78
    %v565 = vunpack.c.l.b16 %v79
    %v566 = vunpack.c.l.b16 %v80
    %v567 = vunpack.c.l.b16 %v81
    %v568 = vunpack.c.l.b16 %v82
    %v569 = vunpack.c.l.b16 %v83
    %v570 = vunpack.c.l.b16 %v84
    %v571 = vunpack.c.l.b16 %v85
    %v572 = vunpack.c.l.b16 %v86
    %v573 = vpack.c.b16 %v558, %v557
    %v574 = vpack.c.b16 %v560, %v559
    %v575 = vpack.c.b16 %v562, %v561
    %v576 = vpack.c.b16 %v564, %v563
    %v577 = vpack.c.b16 %v566, %v565
    %v578 = vpack.c.b16 %v568, %v567
    %v579 = vpack.c.b16 %v570, %v569
    %v580 = vpack.c.b16 %v572, %v571
    %589 = vmatprep.subr.bf16.mxu0 0
    %590 = vmatpush1.bf16.msra.mxu0 %v573
    %591 = vmatprep.subr.bf16.mxu0 0
    %592 = vmatpush1.bf16.msra.mxu0 %v574
    %593 = vmatprep.subr.bf16.mxu0 0
    %594 = vmatpush1.bf16.msra.mxu0 %v575
    %595 = vmatprep.subr.bf16.mxu0 0
    %596 = vmatpush1.bf16.msra.mxu0 %v576
    %597 = vmatprep.subr.bf16.mxu0 0
    %598 = vmatpush1.bf16.msra.mxu0 %v577
    %599 = vmatprep.subr.bf16.mxu0 0
    %600 = vmatpush1.bf16.msra.mxu0 %v578
    %601 = vmatprep.subr.bf16.mxu0 0
    %602 = vmatpush1.bf16.msra.mxu0 %v579
    %603 = vmatprep.subr.bf16.mxu0 0
    %604 = vmatpush1.bf16.msra.mxu0 %v580
    %605 = vmatprep.subr.bf16.mxu0 0
    %606 = vmatpush1.bf16.msra.mxu0 0
    %607 = vmatprep.subr.bf16.mxu0 0
    %608 = vmatpush1.bf16.msra.mxu0 0
    %609 = vmatprep.subr.bf16.mxu0 0
    %610 = vmatpush1.bf16.msra.mxu0 0
    %611 = vmatprep.subr.bf16.mxu0 0
    %612 = vmatpush1.bf16.msra.mxu0 0
    %613 = vmatprep.subr.bf16.mxu0 0
    %614 = vmatpush1.bf16.msra.mxu0 0
    %615 = vmatprep.subr.bf16.mxu0 0
    %616 = vmatpush1.bf16.msra.mxu0 0
    %617 = vmatprep.subr.bf16.mxu0 0
    %618 = vmatpush1.bf16.msra.mxu0 0
    %619 = vmatprep.subr.bf16.mxu0 0
    %620 = vmatpush1.bf16.msra.mxu0 0
    %621 = vmatprep.mubr.bf16.mxu0 0
    %622 = vmatmul.mubr.bf16.gmra.mrb[0].mxu0 %v451
    %v623 = vpop.f32.mrb[0].mxu0
    %v624 = vadd.f32 0.0, %v623
    %v625 = vpop.f32.mrb[0].mxu0
    %v626 = vpop.f32.mrb[0].mxu0
    %v627 = vadd.f32 0.0, %v626
    %v628 = vpop.f32.mrb[0].mxu0
    %629 = vdwg.mxu0
    %630 = vst [vmem:[#allocation2] sm:$0xff] %v535
    %631 = vst [vmem:[#allocation2 + $0x8] sm:$0xff] %v538
    %632 = vst [vmem:[#allocation2 + $0x10] sm:$0xff] %v624
    %633 = vst [vmem:[#allocation2 + $0x18] sm:$0xff] %v627
    // Predicated region
    $region18: #{tpu_custom_call.1} parent=1 // pred_check
      _
    $region19: #{tpu_custom_call.1} parent=1 // pred_check_branch
      %635 = sbr.rel (0) target = $region21
    $region20: #{tpu_custom_call.1} parent=1 // pred_region
      %s637 = ssub.s32 512, 512
      %638 = vsyncadd [#allocation3], %s637
      %s639 = sshll.u32 [#allocation2], 4
      %s640 = int_to_ptr.vmem [resolvable:$true] %s639
      %645 = dma.vmem_to_hbm [thread:$0]  %s640, 512, %s4, [#allocation3], 128, 128, 8
    $region21: #{tpu_custom_call.1} parent=1 // pred_fallthru
      _
    // Predicated region
    $region22: #{tpu_custom_call.1} parent=1 // pred_check
      _
    $region23: #{tpu_custom_call.1} parent=1 // pred_check_branch
      %647 = sbr.rel (0) target = $region25
    $region24: #{tpu_custom_call.1} parent=1 // pred_region
      %648 = dma.done [#allocation3], 512
    $region25: #{tpu_custom_call.1} parent=1 // pred_fallthru
      _
    %649 = vsyncpa [#allocation3], 1

</llo_original>
